<compile_context>
chip_gen: v6e
topology: v6e:2x2x1
jax: 0.10.0
libtpu: 0.0.40
codegen_flags: <defaults>
</compile_context>

<pallas_src>
import functools

import jax
import jax.numpy as jnp
import numpy as np
from jax.experimental import pallas as pl
from jax.experimental.pallas import tpu as pltpu


def _round_up(x, m):
    return ((x + m - 1) // m) * m


def _sim_kernel(img_ref, txt_ref, i2t_ref, t2i_ref, *, inv_n):
    """One (i, j) grid step: one (TM, TN) similarity tile, full K in-block.

    img_ref : (TM, K_p)  bf16 image-feature tile (row block i)
    txt_ref : (K_p, TN)  bf16 text-feature tile, (K, N) layout (col block j)
    i2t_ref : (TM, TN)   f32 image->text similarity tile
    t2i_ref : (TN, TM)   f32 text->image similarity tile (transposed write)
    """
    acc = jnp.dot(img_ref[...], txt_ref[...],
                  preferred_element_type=jnp.float32)
    acc = acc * inv_n                      # mean over backbones, fused
    i2t_ref[...] = acc
    t2i_ref[...] = acc.T                   # XLU tile transpose, hides under MXU time


def clipret_multiple_forward(image_features, text_features, *, tm=512, tn=512):
    """image_features: list (len n_model) of (N_img, D_i), L2-normalized
       text_features : list (len n_model) of (N_txt, D_i), L2-normalized
       returns (sims_i2t, sims_t2i) matching the PyTorch forward."""
    n_model = len(image_features)
    assert len(text_features) == n_model and n_model >= 1

    n_img = int(image_features[0].shape[0])
    n_txt = int(text_features[0].shape[0])
    k_dim = sum(int(f.shape[1]) for f in image_features)
    assert sum(int(f.shape[1]) for f in text_features) == k_dim

    # --- Build bf16 operands in canonical layouts; concat + K-pad in ONE pass ---
    k_p = _round_up(k_dim, 128)
    img_parts = [f.astype(jnp.bfloat16) for f in image_features]          # (N_img, D_i)
    txt_parts = [f.astype(jnp.bfloat16).T for f in text_features]         # (D_i, N_txt)
    if k_p != k_dim:
        # Zero padding along K only: exact for the dot products.
        img_parts.append(jnp.zeros((n_img, k_p - k_dim), jnp.bfloat16))
        txt_parts.append(jnp.zeros((k_p - k_dim, n_txt), jnp.bfloat16))
    img = jnp.concatenate(img_parts, axis=1)      # (N_img, K_p)
    txt = jnp.concatenate(txt_parts, axis=0)      # (K_p, N_txt)

    # --- Tile sizes ---
    # TM clamps to a multiple of 128 so the t2i out-spec's last dim stays
    # lane-aligned; TN clamps to a multiple of 256 (v6e/v7x MXU column width).
    tm = min(tm, _round_up(n_img, 128))
    tn = min(tn, _round_up(n_txt, 256))

    grid = (pl.cdiv(n_img, tm), pl.cdiv(n_txt, tn))   # ragged edge blocks allowed
    kernel = functools.partial(_sim_kernel, inv_n=np.float32(1.0 / n_model))

    sims_i2t, sims_t2i = pl.pallas_call(
        kernel,
        out_shape=(jax.ShapeDtypeStruct((n_img, n_txt), jnp.float32),
                   jax.ShapeDtypeStruct((n_txt, n_img), jnp.float32)),
        grid_spec=pltpu.PrefetchScalarGridSpec(
            num_scalar_prefetch=0,
            grid=grid,
            in_specs=[
                pl.BlockSpec((tm, k_p), lambda i, j: (i, 0)),
                pl.BlockSpec((k_p, tn), lambda i, j: (0, j)),
            ],
            out_specs=[
                pl.BlockSpec((tm, tn), lambda i, j: (i, j)),
                pl.BlockSpec((tn, tm), lambda i, j: (j, i)),
            ],
        ),
        compiler_params=pltpu.CompilerParams(
            dimension_semantics=("parallel", "parallel"),
        ),
    )(img, txt)

    return sims_i2t, sims_t2i


def _l2_normalize(x):
    # matches feat / feat.norm(dim=1, keepdim=True)
    return x / jnp.linalg.norm(x, axis=1, keepdims=True)


if __name__ == "__main__":
    # Synthetic setup: 2 backbones with different feature dims (sum 246 -> padded
    # to 256 along K), N chosen to exercise ragged edge blocks in both grid dims.
    key = jax.random.PRNGKey(0)
    n_model = 2
    feat_dims = [96, 150]
    n_img, n_txt = 160, 200

    img_feats, txt_feats = [], []
    for d in feat_dims:
        key, k1, k2 = jax.random.split(key, 3)
        ifeat = jax.random.normal(k1, (n_img, d), dtype=jnp.float32)
        tfeat = jax.random.normal(k2, (n_txt, d), dtype=jnp.float32)
        # The stored self.image_features / self.text_features are L2-normalized.
        img_feats.append(_l2_normalize(ifeat))
        txt_feats.append(_l2_normalize(tfeat))

    # Pure-JAX f32 reference of the PyTorch forward (per-model matmul, then mean).
    ref_i2t = jnp.mean(
        jnp.stack([img_feats[i] @ txt_feats[i].T for i in range(n_model)], 0), 0)
    ref_t2i = ref_i2t.T

    # Small explicit tiles -> multi-tile ragged grid (2, 2).
    sims_i2t, sims_t2i = clipret_multiple_forward(
        img_feats, txt_feats, tm=128, tn=128)
    jax.block_until_ready((sims_i2t, sims_t2i))
    assert sims_i2t.shape == (n_img, n_txt)
    assert sims_t2i.shape == (n_txt, n_img)
    # bf16 inputs with f32 accumulation: agreement with the f32 reference is ~1e-3.
    np.testing.assert_allclose(np.asarray(sims_i2t), np.asarray(ref_i2t),
                               rtol=0, atol=2e-2)
    np.testing.assert_allclose(np.asarray(sims_t2i), np.asarray(ref_t2i),
                               rtol=0, atol=2e-2)

    # Default (production-size) tile path -> clamped tiles, grid (1, 1).
    sims_i2t2, sims_t2i2 = clipret_multiple_forward(img_feats, txt_feats)
    jax.block_until_ready((sims_i2t2, sims_t2i2))
    np.testing.assert_allclose(np.asarray(sims_i2t2), np.asarray(ref_i2t),
                               rtol=0, atol=2e-2)
    np.testing.assert_allclose(np.asarray(sims_t2i2), np.asarray(ref_t2i),
                               rtol=0, atol=2e-2)

    print("KERNEL_OK")
</pallas_src>

<mosaic_0001>
module attributes {stable_mosaic.version = 11 : i64} {
  func.func @_sim_kernel(%arg0: i32, %arg1: i32, %arg2: memref<128x256xbf16, #tpu.memory_space<vmem>>, %arg3: memref<256x128xbf16, #tpu.memory_space<vmem>>, %arg4: memref<128x128xf32, #tpu.memory_space<vmem>>, %arg5: memref<128x128xf32, #tpu.memory_space<vmem>>) attributes {dimension_semantics = [#tpu.dimension_semantics<parallel>, #tpu.dimension_semantics<parallel>], iteration_bounds = array<i64: 2, 2>, scalar_prefetch = 0 : i64, scratch_operands = 0 : i64, tpu.core_type = #tpu.core_type<tc>, window_params = [{transform_indices = @transform_0, window_bounds = array<i64: 128, 256>}, {transform_indices = @transform_1, window_bounds = array<i64: 256, 128>}, {transform_indices = @transform_2, window_bounds = array<i64: 128, 128>}, {transform_indices = @transform_3, window_bounds = array<i64: 128, 128>}]} {
    %c0 = arith.constant 0 : index
    %c0_0 = arith.constant 0 : index
    %0 = vector.load %arg2[%c0, %c0_0] : memref<128x256xbf16, #tpu.memory_space<vmem>>, vector<128x256xbf16>
    %c0_1 = arith.constant 0 : index
    %c0_2 = arith.constant 0 : index
    %1 = vector.load %arg3[%c0_1, %c0_2] : memref<256x128xbf16, #tpu.memory_space<vmem>>, vector<256x128xbf16>
    %cst = arith.constant dense<0.000000e+00> : vector<128x128xf32>
    %2 = tpu.matmul %0, %1, %cst {dimension_numbers = #tpu.dot_dimension_numbers<[1], [0], [0], [1], [0, 0, 1, 1], [], []>} : vector<128x256xbf16>, vector<256x128xbf16>, vector<128x128xf32> -> vector<128x128xf32>
    %cst_3 = arith.constant 5.000000e-01 : f32
    %3 = vector.broadcast %cst_3 : f32 to vector<128x128xf32>
    %4 = arith.mulf %2, %3 : vector<128x128xf32>
    %c0_4 = arith.constant 0 : index
    %c0_5 = arith.constant 0 : index
    %5 = vector.load %arg4[%c0_4, %c0_5] : memref<128x128xf32, #tpu.memory_space<vmem>>, vector<128x128xf32>
    tpu.vector_store %arg4[%c0_4, %c0_5], %4 {strides = array<i32>} : memref<128x128xf32, #tpu.memory_space<vmem>>, vector<128x128xf32>,
    %6 = tpu.transpose %4, [1, 0] : vector<128x128xf32> -> vector<128x128xf32>
    %c0_6 = arith.constant 0 : index
    %c0_7 = arith.constant 0 : index
    %7 = vector.load %arg5[%c0_6, %c0_7] : memref<128x128xf32, #tpu.memory_space<vmem>>, vector<128x128xf32>
    tpu.vector_store %arg5[%c0_6, %c0_7], %6 {strides = array<i32>} : memref<128x128xf32, #tpu.memory_space<vmem>>, vector<128x128xf32>,
    return
  }
  func.func @transform_0(%arg0: i32, %arg1: i32) -> (i32, i32) {
    %c0_i32 = arith.constant 0 : i32
    %c0_i32_0 = arith.constant 0 : i32
    return %arg0, %c0_i32 : i32, i32
  }
  func.func @transform_1(%arg0: i32, %arg1: i32) -> (i32, i32) {
    %c0_i32 = arith.constant 0 : i32
    %c0_i32_0 = arith.constant 0 : i32
    return %c0_i32, %arg1 : i32, i32
  }
  func.func @transform_2(%arg0: i32, %arg1: i32) -> (i32, i32) {
    %c0_i32 = arith.constant 0 : i32
    return %arg0, %arg1 : i32, i32
  }
  func.func @transform_3(%arg0: i32, %arg1: i32) -> (i32, i32) {
    %c0_i32 = arith.constant 0 : i32
    return %arg1, %arg0 : i32, i32
  }
}

</mosaic_0001>

<llo_original>
// kernel: tpu_custom_call.1
$region0: #{tpu_custom_call.1}
  #allocation0 [shape = 'u32[]', space=smem, size = 0x4, offset = 0x4, fixed_abs, tag = 'smem constant byte address 0x4 - core index']
  #allocation1 [shape = 'u32[144,128]{1,0:T(1,128)}', space=vmem, size = 0x12000, scoped, tag = 'internal scratch']
  %s0 = inlined_call_operand.vmem [shape: bf16[160,256], index: 0, kind: input, shape index: {}]
  %s1 = inlined_call_operand.vmem [shape: bf16[256,200], index: 1, kind: input, shape index: {}]
  %s2 = inlined_call_operand.hbm [shape: f32[160,200], index: 2, kind: output, shape index: {0}]
  %s3 = inlined_call_operand.vmem [shape: f32[200,160], index: 3, kind: output, shape index: {1}]
  %4 = xla_tuple %s2, %s3
  %s5 = sld [smem:[#allocation0]]
  $region138: #{tpu_custom_call.1} parent=0
    _
  %s7 = ssub.s32 1, %s5
  %s8 = scalar_select 0, %s7, %s5
  $region1: #{tpu_custom_call.1} parent=0
    #allocation2 [shape = 'u8[131072]{0}', space=vmem, size = 0x20000, scoped, tag = 'input window, operand 1']
    #allocation3 [shape = 'u8[131072]{0}', space=vmem, size = 0x20000, scoped, tag = 'output window, operand 0']
    #allocation4 [shape = 's32[2]{0}', space=sflag, size = 0x8, scoped, tag = 'scoped memory for tpu_custom_call.1']
    #allocation5 [shape = 'u8[131072]{0}', space=vmem, size = 0x20000, scoped, tag = 'output window, operand 1']
    %9 = vsyncpa [#allocation4], 0
    %s10 = scalar_lea.sflag [#allocation4], 1
    %11 = vsyncpa %s10, 0
    loop: start=0, step=1, limit=6
    $region2: #{tpu_custom_call.1} parent=1 // loop_pre_header
      _
    $region3: #{tpu_custom_call.1} parent=1 // loop_header
      %s13 = sphi 0, %s17
      %p14 = scmp.ge.s32.totalorder %s13, 6
      %s20 = sphi 0, %s32
      %s21 = sphi 0, %s28
      %s22 = sphi 0, %s20
      %s23 = sphi 0, %s21
      %s24 = sphi 0, %s22
      %s25 = sphi 0, %s23
      %s35 = sphi 0, %s37
      %s38 = sphi 0, %s35
      %s39 = sphi 0, %s38
      %s55 = sphi 0, %s39
      %s61 = sphi 0, %s63
      %s64 = sphi 0, %s61
      %s65 = sphi 0, %s64
      %s81 = sphi 0, %s65
      %s89 = sphi 0, %s91
      %s92 = sphi 0, %s89
      %s93 = sphi 0, %s92
      %s109 = sphi 0, %s93
      %s117 = sphi 0, %s119
      %s120 = sphi 0, %s117
      %s121 = sphi 0, %s120
      %s137 = sphi 0, %s121
    $region4: #{tpu_custom_call.1} parent=1 // loop_header_branch
      %16 = sbr.rel (%p14) target = $region8
    $region5: #{tpu_custom_call.1} parent=1 // loop_body
      %s18 = ssub.s32 %s13, 1
      %s19 = ssub.s32 %s13, 2
      %s26 = sadd.s32 1, %s21
      %p27 = scmp.ge.s32.totalorder %s26, 2
      %s28 = scalar_select %p27, 0, %s26
      %s29 = sadd.s32 1, %s20
      %s30 = scalar_select %p27, %s29, %s20
      %p31 = scmp.ge.s32.totalorder %s30, 2
      %s32 = scalar_select %p31, 0, %s30
      %s33 = ssub.s32 %s20, %s32
      %p34 = scmp.eq.s32.totalorder %s33, 0
      %s36 = sadd.s32 %s35, 1
      %s37 = scalar_select %p34, %s35, %s36
      %p40 = pneg %p34
      %p41 = scmp.eq.s32.totalorder %s13, 3
      %p42 = por %p40, %p41
      %p43 = scmp.ne.s32.totalorder %s35, %s38
      %p44 = scmp.eq.s32.totalorder %s13, 0
      %p45 = por %p43, %p44
      %p46 = scmp.ne.s32.totalorder %s35, %s38
      %p47 = scmp.eq.s32.totalorder %s18, 3
      %p48 = por %p46, %p47
      %p49 = scmp.ne.s32.totalorder %s38, %s39
      %p50 = scmp.eq.s32.totalorder %s18, 0
      %p51 = por %p49, %p50
      %p52 = scmp.ne.s32.totalorder %s38, %s39
      %p53 = scmp.eq.s32.totalorder %s19, 3
      %p54 = por %p52, %p53
      %p56 = scmp.ne.s32.totalorder %s39, %s55
      %p57 = scmp.eq.s32.totalorder %s19, 0
      %p58 = por %p56, %p57
      %s59 = ssub.s32 %s21, %s28
      %p60 = scmp.eq.s32.totalorder %s59, 0
      %s62 = sadd.s32 %s61, 1
      %s63 = scalar_select %p60, %s61, %s62
      %p66 = pneg %p60
      %p67 = scmp.eq.s32.totalorder %s13, 3
      %p68 = por %p66, %p67
      %p69 = scmp.ne.s32.totalorder %s61, %s64
      %p70 = scmp.eq.s32.totalorder %s13, 0
      %p71 = por %p69, %p70
      %p72 = scmp.ne.s32.totalorder %s61, %s64
      %p73 = scmp.eq.s32.totalorder %s18, 3
      %p74 = por %p72, %p73
      %p75 = scmp.ne.s32.totalorder %s64, %s65
      %p76 = scmp.eq.s32.totalorder %s18, 0
      %p77 = por %p75, %p76
      %p78 = scmp.ne.s32.totalorder %s64, %s65
      %p79 = scmp.eq.s32.totalorder %s19, 3
      %p80 = por %p78, %p79
      %p82 = scmp.ne.s32.totalorder %s65, %s81
      %p83 = scmp.eq.s32.totalorder %s19, 0
      %p84 = por %p82, %p83
      %s85 = ssub.s32 %s20, %s32
      %s86 = ssub.s32 %s21, %s28
      %s87 = sor.u32 %s85, %s86
      %p88 = scmp.eq.s32.totalorder %s87, 0
      %s90 = sadd.s32 %s89, 1
      %s91 = scalar_select %p88, %s89, %s90
      %p94 = pneg %p88
      %p95 = scmp.eq.s32.totalorder %s13, 3
      %p96 = por %p94, %p95
      %p97 = scmp.ne.s32.totalorder %s89, %s92
      %p98 = scmp.eq.s32.totalorder %s13, 0
      %p99 = por %p97, %p98
      %p100 = scmp.ne.s32.totalorder %s89, %s92
      %p101 = scmp.eq.s32.totalorder %s18, 3
      %p102 = por %p100, %p101
      %p103 = scmp.ne.s32.totalorder %s92, %s93
      %p104 = scmp.eq.s32.totalorder %s18, 0
      %p105 = por %p103, %p104
      %p106 = scmp.ne.s32.totalorder %s92, %s93
      %p107 = scmp.eq.s32.totalorder %s19, 3
      %p108 = por %p106, %p107
      %p110 = scmp.ne.s32.totalorder %s93, %s109
      %p111 = scmp.eq.s32.totalorder %s19, 0
      %p112 = por %p110, %p111
      %s113 = ssub.s32 %s21, %s28
      %s114 = ssub.s32 %s20, %s32
      %s115 = sor.u32 %s113, %s114
      %p116 = scmp.eq.s32.totalorder %s115, 0
      %s118 = sadd.s32 %s117, 1
      %s119 = scalar_select %p116, %s117, %s118
      %p122 = pneg %p116
      %p123 = scmp.eq.s32.totalorder %s13, 3
      %p124 = por %p122, %p123
      %p125 = scmp.ne.s32.totalorder %s117, %s120
      %p126 = scmp.eq.s32.totalorder %s13, 0
      %p127 = por %p125, %p126
      %p128 = scmp.ne.s32.totalorder %s117, %s120
      %p129 = scmp.eq.s32.totalorder %s18, 3
      %p130 = por %p128, %p129
      %p131 = scmp.ne.s32.totalorder %s120, %s121
      %p132 = scmp.eq.s32.totalorder %s18, 0
      %p133 = por %p131, %p132
      %p134 = scmp.ne.s32.totalorder %s120, %s121
      %p135 = scmp.eq.s32.totalorder %s19, 3
      %p136 = por %p134, %p135
      %p138 = scmp.ne.s32.totalorder %s121, %s137
      %p139 = scmp.eq.s32.totalorder %s19, 0
      %p140 = por %p138, %p139
      %p141 = scmp.le.s32.totalorder 1, %s13
      %p142 = scmp.lt.s32.totalorder %s13, 5
      %p143 = pnand %p141, %p142
      %p144 = pneg %p143
      // Predicated region
      $region9: #{tpu_custom_call.1} parent=5 // pred_check
        _
      $region10: #{tpu_custom_call.1} parent=5 // pred_check_branch
        %146 = sbr.rel (%p143) target = $region12
      $region11: #{tpu_custom_call.1} parent=5 // pred_region
        %s147 = ssub.s32 %s13, 1
      $region12: #{tpu_custom_call.1} parent=5 // pred_fallthru
        _
      %p148 = scmp.lt.s32.totalorder %s13, 4
      // Predicated region
      $region13: #{tpu_custom_call.1} parent=5 // pred_check
        %p149 = pneg %p148
      $region14: #{tpu_custom_call.1} parent=5 // pred_check_branch
        %151 = sbr.rel (%p149) target = $region16
      $region15: #{tpu_custom_call.1} parent=5 // pred_region
        // Predicated region
        $region17: #{tpu_custom_call.1} parent=15 // pred_check
          %p152 = pneg %p45
        $region18: #{tpu_custom_call.1} parent=15 // pred_check_branch
          %154 = sbr.rel (%p152) target = $region20
        $region19: #{tpu_custom_call.1} parent=15 // pred_region
          %s155 = smul.u32 16, %s20
          %s156 = ssub.s32 20, %s155
          %p157 = scmp.lt.s32.totalorder %s156, 16
          %s158 = scalar_select %p157, %s156, 16
          %s159 = smul.u32 64, %s158
          %s160 = smul.u32 %s159, 2
          %p161 = scmp.lt.s32.totalorder %s155, 19
          %s162 = scalar_select %p161, %s155, 19
          %s163 = smul.addr %s162, 2
          %s164 = smul.addr %s163, 4
          %s165 = scalar_lea.vmem %s0, %s164
          %s166 = smul.u32 16, %s20
          %s167 = ssub.s32 20, %s166
          %p168 = scmp.lt.s32.totalorder %s167, 16
          %s169 = scalar_select %p168, %s167, 16
          %s170 = smul.u32 64, %s169
          %s171 = smul.u32 %s170, 2
        $region20: #{tpu_custom_call.1} parent=15 // pred_fallthru
          _
        // Predicated region
        $region21: #{tpu_custom_call.1} parent=15 // pred_check
          %p172 = pneg %p71
        $region22: #{tpu_custom_call.1} parent=15 // pred_check_branch
          %174 = sbr.rel (%p172) target = $region24
        $region23: #{tpu_custom_call.1} parent=15 // pred_region
          %s175 = sand.u32 %s61, 1
          %s176 = sand.u32 %s61, 1
          %s177 = smul.addr %s176, 128
          %s178 = scalar_lea.vmem [#allocation2], %s177
          %s179 = smul.addr %s21, 4
          %s180 = scalar_lea.vmem %s1, %s179
          // Predicated region
          $region25: #{tpu_custom_call.1} parent=23 // pred_check
            _
          $region26: #{tpu_custom_call.1} parent=23 // pred_check_branch
            %182 = sbr.rel (0) target = $region28
          $region27: #{tpu_custom_call.1} parent=23 // pred_region
            // Predicated region
            $region29: #{tpu_custom_call.1} parent=27 // pred_check
              _
            $region30: #{tpu_custom_call.1} parent=27 // pred_check_branch
              %184 = sbr.rel target = $region32
            $region31: #{tpu_custom_call.1} parent=27 // pred_region
              // Predicated region
              $region44: #{tpu_custom_call.1} parent=31 // pred_check
                _
              $region45: #{tpu_custom_call.1} parent=31 // pred_check_branch
                %262 = sbr.rel (0) target = $region47
              $region46: #{tpu_custom_call.1} parent=31 // pred_region
                loop: start=0, step=1, limit=1
                $region48: #{tpu_custom_call.1} parent=46 // loop_pre_header
                  _
                $region49: #{tpu_custom_call.1} parent=46 // loop_header
                  %s264 = sphi 0, %s268
                  %p265 = scmp.ge.s32.totalorder %s264, 1
                  %s269 = sphi %s180, %s180
                  %s270 = sphi %s178, %s178
                $region50: #{tpu_custom_call.1} parent=46 // loop_header_branch
                  %267 = sbr.rel (%p265) target = $region54
                $region51: #{tpu_custom_call.1} parent=46 // loop_body
                  _
                $region52: #{tpu_custom_call.1} parent=46 // loop_footer
                  %s268 = sadd.s32 1, %s264
                $region53: #{tpu_custom_call.1} parent=46 // loop_footer_branch
                  %263 = sbr.rel target = $region49
                $region54: #{tpu_custom_call.1} parent=46 // loop_exit
                  _
                %s272 = ssub.s32 16, 1
                loop: start=0, step=1, limit=1
                $region55: #{tpu_custom_call.1} parent=46 // loop_pre_header
                  _
                $region56: #{tpu_custom_call.1} parent=46 // loop_header
                  %s274 = sphi 0, %s278
                  %p275 = scmp.ge.s32.totalorder %s274, 1
                  %s279 = sphi %s180, %s180
                  %s280 = sphi %s178, %s178
                $region57: #{tpu_custom_call.1} parent=46 // loop_header_branch
                  %277 = sbr.rel (%p275) target = $region61
                $region58: #{tpu_custom_call.1} parent=46 // loop_body
                  %v281 = vld [vmem:[%s279] sm:%s272]
                  %282 = vst [vmem:[%s280] sm:%s272] %v281
                  %v283 = vld [vmem:[%s279 + $0x8] sm:%s272]
                  %284 = vst [vmem:[%s280 + $0x4] sm:%s272] %v283
                  %v285 = vld [vmem:[%s279 + $0x10] sm:%s272]
                  %286 = vst [vmem:[%s280 + $0x8] sm:%s272] %v285
                  %v287 = vld [vmem:[%s279 + $0x18] sm:%s272]
                  %288 = vst [vmem:[%s280 + $0xc] sm:%s272] %v287
                  %v289 = vld [vmem:[%s279 + $0x20] sm:%s272]
                  %290 = vst [vmem:[%s280 + $0x10] sm:%s272] %v289
                  %v291 = vld [vmem:[%s279 + $0x28] sm:%s272]
                  %292 = vst [vmem:[%s280 + $0x14] sm:%s272] %v291
                  %v293 = vld [vmem:[%s279 + $0x30] sm:%s272]
                  %294 = vst [vmem:[%s280 + $0x18] sm:%s272] %v293
                  %v295 = vld [vmem:[%s279 + $0x38] sm:%s272]
                  %296 = vst [vmem:[%s280 + $0x1c] sm:%s272] %v295
                  %v297 = vld [vmem:[%s279 + $0x40] sm:%s272]
                  %298 = vst [vmem:[%s280 + $0x20] sm:%s272] %v297
                  %v299 = vld [vmem:[%s279 + $0x48] sm:%s272]
                  %300 = vst [vmem:[%s280 + $0x24] sm:%s272] %v299
                  %v301 = vld [vmem:[%s279 + $0x50] sm:%s272]
                  %302 = vst [vmem:[%s280 + $0x28] sm:%s272] %v301
                  %v303 = vld [vmem:[%s279 + $0x58] sm:%s272]
                  %304 = vst [vmem:[%s280 + $0x2c] sm:%s272] %v303
                  %v305 = vld [vmem:[%s279 + $0x60] sm:%s272]
                  %306 = vst [vmem:[%s280 + $0x30] sm:%s272] %v305
                  %v307 = vld [vmem:[%s279 + $0x68] sm:%s272]
                  %308 = vst [vmem:[%s280 + $0x34] sm:%s272] %v307
                  %v309 = vld [vmem:[%s279 + $0x70] sm:%s272]
                  %310 = vst [vmem:[%s280 + $0x38] sm:%s272] %v309
                  %v311 = vld [vmem:[%s279 + $0x78] sm:%s272]
                  %312 = vst [vmem:[%s280 + $0x3c] sm:%s272] %v311
                  %v313 = vld [vmem:[%s279 + $0x80] sm:%s272]
                  %314 = vst [vmem:[%s280 + $0x40] sm:%s272] %v313
                  %v315 = vld [vmem:[%s279 + $0x88] sm:%s272]
                  %316 = vst [vmem:[%s280 + $0x44] sm:%s272] %v315
                  %v317 = vld [vmem:[%s279 + $0x90] sm:%s272]
                  %318 = vst [vmem:[%s280 + $0x48] sm:%s272] %v317
                  %v319 = vld [vmem:[%s279 + $0x98] sm:%s272]
                  %320 = vst [vmem:[%s280 + $0x4c] sm:%s272] %v319
                  %v321 = vld [vmem:[%s279 + $0xa0] sm:%s272]
                  %322 = vst [vmem:[%s280 + $0x50] sm:%s272] %v321
                  %v323 = vld [vmem:[%s279 + $0xa8] sm:%s272]
                  %324 = vst [vmem:[%s280 + $0x54] sm:%s272] %v323
                  %v325 = vld [vmem:[%s279 + $0xb0] sm:%s272]
                  %326 = vst [vmem:[%s280 + $0x58] sm:%s272] %v325
                  %v327 = vld [vmem:[%s279 + $0xb8] sm:%s272]
                  %328 = vst [vmem:[%s280 + $0x5c] sm:%s272] %v327
                  %v329 = vld [vmem:[%s279 + $0xc0] sm:%s272]
                  %330 = vst [vmem:[%s280 + $0x60] sm:%s272] %v329
                  %v331 = vld [vmem:[%s279 + $0xc8] sm:%s272]
                  %332 = vst [vmem:[%s280 + $0x64] sm:%s272] %v331
                  %v333 = vld [vmem:[%s279 + $0xd0] sm:%s272]
                  %334 = vst [vmem:[%s280 + $0x68] sm:%s272] %v333
                  %v335 = vld [vmem:[%s279 + $0xd8] sm:%s272]
                  %336 = vst [vmem:[%s280 + $0x6c] sm:%s272] %v335
                  %v337 = vld [vmem:[%s279 + $0xe0] sm:%s272]
                  %338 = vst [vmem:[%s280 + $0x70] sm:%s272] %v337
                  %v339 = vld [vmem:[%s279 + $0xe8] sm:%s272]
                  %340 = vst [vmem:[%s280 + $0x74] sm:%s272] %v339
                  %v341 = vld [vmem:[%s279 + $0xf0] sm:%s272]
                  %342 = vst [vmem:[%s280 + $0x78] sm:%s272] %v341
                  %v343 = vld [vmem:[%s279 + $0xf8] sm:%s272]
                  %344 = vst [vmem:[%s280 + $0x7c] sm:%s272] %v343
                $region59: #{tpu_custom_call.1} parent=46 // loop_footer
                  %s278 = sadd.s32 1, %s274
                $region60: #{tpu_custom_call.1} parent=46 // loop_footer_branch
                  %273 = sbr.rel target = $region56
                $region61: #{tpu_custom_call.1} parent=46 // loop_exit
                  _
              $region47: #{tpu_custom_call.1} parent=31 // pred_fallthru
                _
            $region32: #{tpu_custom_call.1} parent=27 // pred_fallthru
              _
            // Predicated region
            $region33: #{tpu_custom_call.1} parent=27 // pred_check
              _
            $region34: #{tpu_custom_call.1} parent=27 // pred_check_branch
              %186 = sbr.rel (0) target = $region36
            $region35: #{tpu_custom_call.1} parent=27 // pred_region
              %s188 = ssub.s32 16, 1
              loop: start=0, step=1, limit=1
              $region37: #{tpu_custom_call.1} parent=35 // loop_pre_header
                _
              $region38: #{tpu_custom_call.1} parent=35 // loop_header
                %s190 = sphi 0, %s194
                %p191 = scmp.ge.s32.totalorder %s190, 1
                %s195 = sphi %s180, %s180
                %s196 = sphi %s178, %s178
              $region39: #{tpu_custom_call.1} parent=35 // loop_header_branch
                %193 = sbr.rel (%p191) target = $region43
              $region40: #{tpu_custom_call.1} parent=35 // loop_body
                %v197 = vld [vmem:[%s195] sm:%s188]
                %198 = vst [vmem:[%s196] sm:%s188] %v197
                %v199 = vld [vmem:[%s195 + $0x8] sm:%s188]
                %200 = vst [vmem:[%s196 + $0x4] sm:%s188] %v199
                %v201 = vld [vmem:[%s195 + $0x10] sm:%s188]
                %202 = vst [vmem:[%s196 + $0x8] sm:%s188] %v201
                %v203 = vld [vmem:[%s195 + $0x18] sm:%s188]
                %204 = vst [vmem:[%s196 + $0xc] sm:%s188] %v203
                %v205 = vld [vmem:[%s195 + $0x20] sm:%s188]
                %206 = vst [vmem:[%s196 + $0x10] sm:%s188] %v205
                %v207 = vld [vmem:[%s195 + $0x28] sm:%s188]
                %208 = vst [vmem:[%s196 + $0x14] sm:%s188] %v207
                %v209 = vld [vmem:[%s195 + $0x30] sm:%s188]
                %210 = vst [vmem:[%s196 + $0x18] sm:%s188] %v209
                %v211 = vld [vmem:[%s195 + $0x38] sm:%s188]
                %212 = vst [vmem:[%s196 + $0x1c] sm:%s188] %v211
                %v213 = vld [vmem:[%s195 + $0x40] sm:%s188]
                %214 = vst [vmem:[%s196 + $0x20] sm:%s188] %v213
                %v215 = vld [vmem:[%s195 + $0x48] sm:%s188]
                %216 = vst [vmem:[%s196 + $0x24] sm:%s188] %v215
                %v217 = vld [vmem:[%s195 + $0x50] sm:%s188]
                %218 = vst [vmem:[%s196 + $0x28] sm:%s188] %v217
                %v219 = vld [vmem:[%s195 + $0x58] sm:%s188]
                %220 = vst [vmem:[%s196 + $0x2c] sm:%s188] %v219
                %v221 = vld [vmem:[%s195 + $0x60] sm:%s188]
                %222 = vst [vmem:[%s196 + $0x30] sm:%s188] %v221
                %v223 = vld [vmem:[%s195 + $0x68] sm:%s188]
                %224 = vst [vmem:[%s196 + $0x34] sm:%s188] %v223
                %v225 = vld [vmem:[%s195 + $0x70] sm:%s188]
                %226 = vst [vmem:[%s196 + $0x38] sm:%s188] %v225
                %v227 = vld [vmem:[%s195 + $0x78] sm:%s188]
                %228 = vst [vmem:[%s196 + $0x3c] sm:%s188] %v227
                %v229 = vld [vmem:[%s195 + $0x80] sm:%s188]
                %230 = vst [vmem:[%s196 + $0x40] sm:%s188] %v229
                %v231 = vld [vmem:[%s195 + $0x88] sm:%s188]
                %232 = vst [vmem:[%s196 + $0x44] sm:%s188] %v231
                %v233 = vld [vmem:[%s195 + $0x90] sm:%s188]
                %234 = vst [vmem:[%s196 + $0x48] sm:%s188] %v233
                %v235 = vld [vmem:[%s195 + $0x98] sm:%s188]
                %236 = vst [vmem:[%s196 + $0x4c] sm:%s188] %v235
                %v237 = vld [vmem:[%s195 + $0xa0] sm:%s188]
                %238 = vst [vmem:[%s196 + $0x50] sm:%s188] %v237
                %v239 = vld [vmem:[%s195 + $0xa8] sm:%s188]
                %240 = vst [vmem:[%s196 + $0x54] sm:%s188] %v239
                %v241 = vld [vmem:[%s195 + $0xb0] sm:%s188]
                %242 = vst [vmem:[%s196 + $0x58] sm:%s188] %v241
                %v243 = vld [vmem:[%s195 + $0xb8] sm:%s188]
                %244 = vst [vmem:[%s196 + $0x5c] sm:%s188] %v243
                %v245 = vld [vmem:[%s195 + $0xc0] sm:%s188]
                %246 = vst [vmem:[%s196 + $0x60] sm:%s188] %v245
                %v247 = vld [vmem:[%s195 + $0xc8] sm:%s188]
                %248 = vst [vmem:[%s196 + $0x64] sm:%s188] %v247
                %v249 = vld [vmem:[%s195 + $0xd0] sm:%s188]
                %250 = vst [vmem:[%s196 + $0x68] sm:%s188] %v249
                %v251 = vld [vmem:[%s195 + $0xd8] sm:%s188]
                %252 = vst [vmem:[%s196 + $0x6c] sm:%s188] %v251
                %v253 = vld [vmem:[%s195 + $0xe0] sm:%s188]
                %254 = vst [vmem:[%s196 + $0x70] sm:%s188] %v253
                %v255 = vld [vmem:[%s195 + $0xe8] sm:%s188]
                %256 = vst [vmem:[%s196 + $0x74] sm:%s188] %v255
                %v257 = vld [vmem:[%s195 + $0xf0] sm:%s188]
                %258 = vst [vmem:[%s196 + $0x78] sm:%s188] %v257
                %v259 = vld [vmem:[%s195 + $0xf8] sm:%s188]
                %260 = vst [vmem:[%s196 + $0x7c] sm:%s188] %v259
              $region41: #{tpu_custom_call.1} parent=35 // loop_footer
                %s194 = sadd.s32 1, %s190
              $region42: #{tpu_custom_call.1} parent=35 // loop_footer_branch
                %189 = sbr.rel target = $region38
              $region43: #{tpu_custom_call.1} parent=35 // loop_exit
                _
            $region36: #{tpu_custom_call.1} parent=27 // pred_fallthru
              _
          $region28: #{tpu_custom_call.1} parent=23 // pred_fallthru
            _
          %345 = vnop
        $region24: #{tpu_custom_call.1} parent=15 // pred_fallthru
          _
      $region16: #{tpu_custom_call.1} parent=5 // pred_fallthru
        _
      %p346 = scmp.le.s32.totalorder 1, %s13
      %p347 = scmp.lt.s32.totalorder %s13, 5
      %p348 = pnand %p346, %p347
      %p349 = pneg %p348
      // Predicated region
      $region62: #{tpu_custom_call.1} parent=5 // pred_check
        _
      $region63: #{tpu_custom_call.1} parent=5 // pred_check_branch
        %351 = sbr.rel (%p348) target = $region65
      $region64: #{tpu_custom_call.1} parent=5 // pred_region
        %s352 = ssub.s32 %s13, 1
        %s353 = sand.u32 %s64, 1
        %s354 = sand.u32 %s64, 1
        %s355 = smul.addr %s354, 128
        %s356 = scalar_lea.vmem [#allocation2], %s355
        // Predicated region
        $region66: #{tpu_custom_call.1} parent=64 // pred_check
          %p357 = pneg %p77
        $region67: #{tpu_custom_call.1} parent=64 // pred_check_branch
          %359 = sbr.rel (%p357) target = $region69
        $region68: #{tpu_custom_call.1} parent=64 // pred_region
          _
        $region69: #{tpu_custom_call.1} parent=64 // pred_fallthru
          _
        %s360 = smul.u32 16, %s22
        %s361 = ssub.s32 20, %s360
        %p362 = scmp.lt.s32.totalorder %s361, 16
        %s363 = scalar_select %p362, %s361, 16
        %s364 = smul.u32 64, %s363
        %s365 = smul.u32 %s364, 2
        %p366 = scmp.lt.s32.totalorder %s360, 19
        %s367 = scalar_select %p366, %s360, 19
        %s368 = smul.addr %s367, 2
        %s369 = smul.addr %s368, 4
        %s370 = scalar_lea.vmem %s0, %s369
        %p371 = pneg %p51
        %p372 = pneg %p48
        %s373 = sand.u32 %s64, 1
        %s374 = sand.u32 %s64, 1
        %s375 = smul.addr %s374, 128
        %s376 = scalar_lea.vmem [#allocation2], %s375
        %p377 = pneg %p77
        %p378 = pneg %p74
        %p379 = pneg %p105
        %p380 = pneg %p102
        %s381 = sand.u32 %s92, 1
        %s382 = scalar_lea.sflag [#allocation4], %s381
        %s383 = sand.u32 %s92, 1
        %s384 = smul.addr %s383, 128
        %s385 = scalar_lea.vmem [#allocation3], %s384
        %p386 = pneg %p133
        %p387 = pneg %p130
        %s388 = sand.u32 %s120, 1
        %s389 = sand.u32 %s120, 1
        %s390 = smul.addr %s389, 128
        %s391 = scalar_lea.vmem [#allocation5], %s390
        %s392 = smul.u32 16, %s22
        %s393 = ssub.s32 20, %s392
        %p394 = scmp.lt.s32.totalorder %s393, 16
        %s395 = scalar_select %p394, %s393, 16
        %s396 = smul.u32 64, %s395
        %s397 = smul.u32 %s396, 2
        %p398 = scmp.lt.s32.totalorder %s392, 19
        %s399 = scalar_select %p398, %s392, 19
        %s400 = smul.addr %s399, 2
        %s401 = smul.addr %s400, 4
        %s402 = scalar_lea.vmem %s0, %s401
        %s403 = smul.u32 16, %s22
        %s404 = ssub.s32 20, %s403
        %p405 = scmp.lt.s32.totalorder %s404, 16
        %s406 = scalar_select %p405, %s404, 16
        %s407 = smul.u32 64, %s406
        %s408 = smul.u32 %s407, 2
        %s409 = smul.u32 16, %s22
        %s410 = ssub.s32 20, %s409
        %p411 = scmp.lt.s32.totalorder %s410, 16
        %s412 = scalar_select %p411, %s410, 16
        %s413 = smul.u32 128, %s412
        %s414 = smul.u32 16, %s23
        %s415 = ssub.s32 25, %s414
        %p416 = scmp.lt.s32.totalorder %s415, 16
        %s417 = scalar_select %p416, %s415, 16
        %s418 = smul.u32 128, %s417
        %v420 = vld [vmem:[%s402] sm:$0xff]
        %v421 = vld [vmem:[%s402 + $0x8] sm:$0xff]
        %v422 = vld [vmem:[%s402 + $0x10] sm:$0xff]
        %v423 = vld [vmem:[%s402 + $0x18] sm:$0xff]
        %v424 = vld [vmem:[%s402 + $0x20] sm:$0xff]
        %v425 = vld [vmem:[%s402 + $0x28] sm:$0xff]
        %v426 = vld [vmem:[%s402 + $0x30] sm:$0xff]
        %v427 = vld [vmem:[%s402 + $0x38] sm:$0xff]
        %v428 = vld [vmem:[%s402 + $0x40] sm:$0xff]
        %v429 = vld [vmem:[%s402 + $0x48] sm:$0xff]
        %v430 = vld [vmem:[%s402 + $0x50] sm:$0xff]
        %v431 = vld [vmem:[%s402 + $0x58] sm:$0xff]
        %v432 = vld [vmem:[%s402 + $0x60] sm:$0xff]
        %v433 = vld [vmem:[%s402 + $0x68] sm:$0xff]
        %v434 = vld [vmem:[%s402 + $0x70] sm:$0xff]
        %v435 = vld [vmem:[%s402 + $0x78] sm:$0xff]
        %v436 = vld [vmem:[%s356] sm:$0xf]
        %v437 = vld [vmem:[%s356 + $0x4] sm:$0xf]
        %v438 = vld [vmem:[%s356 + $0x8] sm:$0xf]
        %v439 = vld [vmem:[%s356 + $0xc] sm:$0xf]
        %v440 = vld [vmem:[%s356 + $0x10] sm:$0xf]
        %v441 = vld [vmem:[%s356 + $0x14] sm:$0xf]
        %v442 = vld [vmem:[%s356 + $0x18] sm:$0xf]
        %v443 = vld [vmem:[%s356 + $0x1c] sm:$0xf]
        %v444 = vld [vmem:[%s356 + $0x20] sm:$0xf]
        %v445 = vld [vmem:[%s356 + $0x24] sm:$0xf]
        %v446 = vld [vmem:[%s356 + $0x28] sm:$0xf]
        %v447 = vld [vmem:[%s356 + $0x2c] sm:$0xf]
        %v448 = vld [vmem:[%s356 + $0x30] sm:$0xf]
        %v449 = vld [vmem:[%s356 + $0x34] sm:$0xf]
        %v450 = vld [vmem:[%s356 + $0x38] sm:$0xf]
        %v451 = vld [vmem:[%s356 + $0x3c] sm:$0xf]
        %v452 = vld [vmem:[%s356 + $0x40] sm:$0xf]
        %v453 = vld [vmem:[%s356 + $0x44] sm:$0xf]
        %v454 = vld [vmem:[%s356 + $0x48] sm:$0xf]
        %v455 = vld [vmem:[%s356 + $0x4c] sm:$0xf]
        %v456 = vld [vmem:[%s356 + $0x50] sm:$0xf]
        %v457 = vld [vmem:[%s356 + $0x54] sm:$0xf]
        %v458 = vld [vmem:[%s356 + $0x58] sm:$0xf]
        %v459 = vld [vmem:[%s356 + $0x5c] sm:$0xf]
        %v460 = vld [vmem:[%s356 + $0x60] sm:$0xf]
        %v461 = vld [vmem:[%s356 + $0x64] sm:$0xf]
        %v462 = vld [vmem:[%s356 + $0x68] sm:$0xf]
        %v463 = vld [vmem:[%s356 + $0x6c] sm:$0xf]
        %v464 = vld [vmem:[%s356 + $0x70] sm:$0xf]
        %v465 = vld [vmem:[%s356 + $0x74] sm:$0xf]
        %v466 = vld [vmem:[%s356 + $0x78] sm:$0xf]
        %v467 = vld [vmem:[%s356 + $0x7c] sm:$0xf]
        %v484 = vunpack.c.l.b16 %v420
        %v485 = vunpack.c.h.b16 %v420
        %v486 = vunpack.c.l.b16 %v421
        %v487 = vunpack.c.h.b16 %v421
        %v488 = vunpack.c.l.b16 %v422
        %v489 = vunpack.c.h.b16 %v422
        %v490 = vunpack.c.l.b16 %v423
        %v491 = vunpack.c.h.b16 %v423
        %v492 = vunpack.c.l.b16 %v424
        %v493 = vunpack.c.h.b16 %v424
        %v494 = vunpack.c.l.b16 %v425
        %v495 = vunpack.c.h.b16 %v425
        %v496 = vunpack.c.l.b16 %v426
        %v497 = vunpack.c.h.b16 %v426
        %v498 = vunpack.c.l.b16 %v427
        %v499 = vunpack.c.h.b16 %v427
        %v500 = vunpack.c.l.b16 %v428
        %v501 = vunpack.c.h.b16 %v428
        %v502 = vunpack.c.l.b16 %v429
        %v503 = vunpack.c.h.b16 %v429
        %v504 = vunpack.c.l.b16 %v430
        %v505 = vunpack.c.h.b16 %v430
        %v506 = vunpack.c.l.b16 %v431
        %v507 = vunpack.c.h.b16 %v431
        %v508 = vunpack.c.l.b16 %v432
        %v509 = vunpack.c.h.b16 %v432
        %v510 = vunpack.c.l.b16 %v433
        %v511 = vunpack.c.h.b16 %v433
        %v512 = vunpack.c.l.b16 %v434
        %v513 = vunpack.c.h.b16 %v434
        %v514 = vunpack.c.l.b16 %v435
        %v515 = vunpack.c.h.b16 %v435
        %v516 = vpack.c.b16 %v486, %v484
        %v517 = vpack.c.b16 %v487, %v485
        %v518 = vpack.c.b16 %v490, %v488
        %v519 = vpack.c.b16 %v491, %v489
        %v520 = vpack.c.b16 %v494, %v492
        %v521 = vpack.c.b16 %v495, %v493
        %v522 = vpack.c.b16 %v498, %v496
        %v523 = vpack.c.b16 %v499, %v497
        %v524 = vpack.c.b16 %v502, %v500
        %v525 = vpack.c.b16 %v503, %v501
        %v526 = vpack.c.b16 %v506, %v504
        %v527 = vpack.c.b16 %v507, %v505
        %v528 = vpack.c.b16 %v510, %v508
        %v529 = vpack.c.b16 %v511, %v509
        %v530 = vpack.c.b16 %v514, %v512
        %v531 = vpack.c.b16 %v515, %v513
        %v580 = vunpack.c.l.b16 %v436
        %v581 = vunpack.c.l.b16 %v437
        %v582 = vunpack.c.l.b16 %v438
        %v583 = vunpack.c.l.b16 %v439
        %v584 = vunpack.c.l.b16 %v440
        %v585 = vunpack.c.l.b16 %v441
        %v586 = vunpack.c.l.b16 %v442
        %v587 = vunpack.c.l.b16 %v443
        %v588 = vunpack.c.l.b16 %v444
        %v589 = vunpack.c.l.b16 %v445
        %v590 = vunpack.c.l.b16 %v446
        %v591 = vunpack.c.l.b16 %v447
        %v592 = vunpack.c.l.b16 %v448
        %v593 = vunpack.c.l.b16 %v449
        %v594 = vunpack.c.l.b16 %v450
        %v595 = vunpack.c.l.b16 %v451
        %v596 = vunpack.c.l.b16 %v452
        %v597 = vunpack.c.l.b16 %v453
        %v598 = vunpack.c.l.b16 %v454
        %v599 = vunpack.c.l.b16 %v455
        %v600 = vunpack.c.l.b16 %v456
        %v601 = vunpack.c.l.b16 %v457
        %v602 = vunpack.c.l.b16 %v458
        %v603 = vunpack.c.l.b16 %v459
        %v604 = vunpack.c.l.b16 %v460
        %v605 = vunpack.c.l.b16 %v461
        %v606 = vunpack.c.l.b16 %v462
        %v607 = vunpack.c.l.b16 %v463
        %v608 = vunpack.c.l.b16 %v464
        %v609 = vunpack.c.l.b16 %v465
        %v610 = vunpack.c.l.b16 %v466
        %v611 = vunpack.c.l.b16 %v467
        %v612 = vpack.c.b16 %v581, %v580
        %v613 = vpack.c.b16 %v583, %v582
        %v614 = vpack.c.b16 %v585, %v584
        %v615 = vpack.c.b16 %v587, %v586
        %v616 = vpack.c.b16 %v589, %v588
        %v617 = vpack.c.b16 %v591, %v590
        %v618 = vpack.c.b16 %v593, %v592
        %v619 = vpack.c.b16 %v595, %v594
        %v620 = vpack.c.b16 %v597, %v596
        %v621 = vpack.c.b16 %v599, %v598
        %v622 = vpack.c.b16 %v601, %v600
        %v623 = vpack.c.b16 %v603, %v602
        %v624 = vpack.c.b16 %v605, %v604
        %v625 = vpack.c.b16 %v607, %v606
        %v626 = vpack.c.b16 %v609, %v608
        %v627 = vpack.c.b16 %v611, %v610
        %644 = vmatprep.subr.bf16.mxu0 0
        %645 = vmatpush1.bf16.msra.mxu0 %v619
        %646 = vmatprep.subr.bf16.mxu0 0
        %647 = vmatpush1.bf16.msra.mxu0 %v618
        %648 = vmatprep.subr.bf16.mxu0 0
        %649 = vmatpush1.bf16.msra.mxu0 %v617
        %650 = vmatprep.subr.bf16.mxu0 0
        %651 = vmatpush1.bf16.msra.mxu0 %v616
        %652 = vmatprep.subr.bf16.mxu0 0
        %653 = vmatpush1.bf16.msra.mxu0 %v615
        %654 = vmatprep.subr.bf16.mxu0 0
        %655 = vmatpush1.bf16.msra.mxu0 %v614
        %656 = vmatprep.subr.bf16.mxu0 0
        %657 = vmatpush1.bf16.msra.mxu0 %v613
        %658 = vmatprep.subr.bf16.mxu0 0
        %659 = vmatpush1.bf16.msra.mxu0 %v612
        %660 = vmatprep.subr.bf16.mxu0 0
        %661 = vmatpush2.bf16.msra.mxu0 %v627
        %662 = vmatprep.subr.bf16.mxu0 0
        %663 = vmatpush2.bf16.msra.mxu0 %v626
        %664 = vmatprep.subr.bf16.mxu0 0
        %665 = vmatpush2.bf16.msra.mxu0 %v625
        %666 = vmatprep.subr.bf16.mxu0 0
        %667 = vmatpush2.bf16.msra.mxu0 %v624
        %668 = vmatprep.subr.bf16.mxu0 0
        %669 = vmatpush2.bf16.msra.mxu0 %v623
        %670 = vmatprep.subr.bf16.mxu0 0
        %671 = vmatpush2.bf16.msra.mxu0 %v622
        %672 = vmatprep.subr.bf16.mxu0 0
        %673 = vmatpush2.bf16.msra.mxu0 %v621
        %674 = vmatprep.subr.bf16.mxu0 0
        %675 = vmatpush2.bf16.msra.mxu0 %v620
        %676 = vmatprep.mubr.bf16.mxu0 %v517
        %677 = vmatmul.mubr.bf16.gmra.mxu0 %v516
        %v678 = vpop.f32.mrf.mxu0
        %v679 = vadd.f32 0.0, %v678
        %v680 = vpop.f32.mrf.mxu0
        %v681 = vpop.f32.mrf.mxu0
        %v682 = vadd.f32 0.0, %v681
        %v683 = vpop.f32.mrf.mxu0
        %684 = vmatprep.mubr.bf16.mxu0 %v519
        %685 = vmatmul.mubr.bf16.gmra.mxu0 %v518
        %v686 = vpop.f32.mrf.mxu0
        %v687 = vadd.f32 0.0, %v686
        %v688 = vpop.f32.mrf.mxu0
        %v689 = vpop.f32.mrf.mxu0
        %v690 = vadd.f32 0.0, %v689
        %v691 = vpop.f32.mrf.mxu0
        %692 = vmatprep.mubr.bf16.mxu0 %v521
        %693 = vmatmul.mubr.bf16.gmra.mxu0 %v520
        %v694 = vpop.f32.mrf.mxu0
        %v695 = vadd.f32 0.0, %v694
        %v696 = vpop.f32.mrf.mxu0
        %v697 = vpop.f32.mrf.mxu0
        %v698 = vadd.f32 0.0, %v697
        %v699 = vpop.f32.mrf.mxu0
        %700 = vmatprep.mubr.bf16.mxu0 %v523
        %701 = vmatmul.mubr.bf16.gmra.mxu0 %v522
        %v702 = vpop.f32.mrf.mxu0
        %v703 = vadd.f32 0.0, %v702
        %v704 = vpop.f32.mrf.mxu0
        %v705 = vpop.f32.mrf.mxu0
        %v706 = vadd.f32 0.0, %v705
        %v707 = vpop.f32.mrf.mxu0
        %708 = vmatprep.mubr.bf16.mxu0 %v525
        %709 = vmatmul.mubr.bf16.gmra.mxu0 %v524
        %v710 = vpop.f32.mrf.mxu0
        %v711 = vadd.f32 0.0, %v710
        %v712 = vpop.f32.mrf.mxu0
        %v713 = vpop.f32.mrf.mxu0
        %v714 = vadd.f32 0.0, %v713
        %v715 = vpop.f32.mrf.mxu0
        %716 = vmatprep.mubr.bf16.mxu0 %v527
        %717 = vmatmul.mubr.bf16.gmra.mxu0 %v526
        %v718 = vpop.f32.mrf.mxu0
        %v719 = vadd.f32 0.0, %v718
        %v720 = vpop.f32.mrf.mxu0
        %v721 = vpop.f32.mrf.mxu0
        %v722 = vadd.f32 0.0, %v721
        %v723 = vpop.f32.mrf.mxu0
        %724 = vmatprep.mubr.bf16.mxu0 %v529
        %725 = vmatmul.mubr.bf16.gmra.mxu0 %v528
        %v726 = vpop.f32.mrf.mxu0
        %v727 = vadd.f32 0.0, %v726
        %v728 = vpop.f32.mrf.mxu0
        %v729 = vpop.f32.mrf.mxu0
        %v730 = vadd.f32 0.0, %v729
        %v731 = vpop.f32.mrf.mxu0
        %732 = vmatprep.mubr.bf16.mxu0 %v531
        %733 = vmatmul.mubr.bf16.gmra.mxu0 %v530
        %v734 = vpop.f32.mrf.mxu0
        %v735 = vadd.f32 0.0, %v734
        %v736 = vpop.f32.mrf.mxu0
        %v737 = vpop.f32.mrf.mxu0
        %v738 = vadd.f32 0.0, %v737
        %v739 = vpop.f32.mrf.mxu0
        %740 = vdwg.mxu0
        %v741 = vmul.f32 %v679, 0.5
        %v742 = vmul.f32 %v682, 0.5
        %v743 = vmul.f32 %v687, 0.5
        %v744 = vmul.f32 %v690, 0.5
        %v745 = vmul.f32 %v695, 0.5
        %v746 = vmul.f32 %v698, 0.5
        %v747 = vmul.f32 %v703, 0.5
        %v748 = vmul.f32 %v706, 0.5
        %v749 = vmul.f32 %v711, 0.5
        %v750 = vmul.f32 %v714, 0.5
        %v751 = vmul.f32 %v719, 0.5
        %v752 = vmul.f32 %v722, 0.5
        %v753 = vmul.f32 %v727, 0.5
        %v754 = vmul.f32 %v730, 0.5
        %v755 = vmul.f32 %v735, 0.5
        %v756 = vmul.f32 %v738, 0.5
        %757 = vst [vmem:[%s385] sm:$0xff] %v741
        %758 = vst [vmem:[%s385 + $0x8] sm:$0xff] %v742
        %759 = vst [vmem:[%s385 + $0x10] sm:$0xff] %v743
        %760 = vst [vmem:[%s385 + $0x18] sm:$0xff] %v744
        %761 = vst [vmem:[%s385 + $0x20] sm:$0xff] %v745
        %762 = vst [vmem:[%s385 + $0x28] sm:$0xff] %v746
        %763 = vst [vmem:[%s385 + $0x30] sm:$0xff] %v747
        %764 = vst [vmem:[%s385 + $0x38] sm:$0xff] %v748
        %765 = vst [vmem:[%s385 + $0x40] sm:$0xff] %v749
        %766 = vst [vmem:[%s385 + $0x48] sm:$0xff] %v750
        %767 = vst [vmem:[%s385 + $0x50] sm:$0xff] %v751
        %768 = vst [vmem:[%s385 + $0x58] sm:$0xff] %v752
        %769 = vst [vmem:[%s385 + $0x60] sm:$0xff] %v753
        %770 = vst [vmem:[%s385 + $0x68] sm:$0xff] %v754
        %771 = vst [vmem:[%s385 + $0x70] sm:$0xff] %v755
        %772 = vst [vmem:[%s385 + $0x78] sm:$0xff] %v756
        %773 = vxpose.xlu0.b32.start [1/16] %v741, 128
        %774 = vxpose.xlu0.b32.cont [2/16] %v742, 128
        %775 = vxpose.xlu0.b32.cont [3/16] %v743, 128
        %776 = vxpose.xlu0.b32.cont [4/16] %v744, 128
        %777 = vxpose.xlu0.b32.cont [5/16] %v745, 128
        %778 = vxpose.xlu0.b32.cont [6/16] %v746, 128
        %779 = vxpose.xlu0.b32.cont [7/16] %v747, 128
        %780 = vxpose.xlu0.b32.cont [8/16] %v748, 128
        %781 = vxpose.xlu0.b32.cont [9/16] %v749, 128
        %782 = vxpose.xlu0.b32.cont [10/16] %v750, 128
        %783 = vxpose.xlu0.b32.cont [11/16] %v751, 128
        %784 = vxpose.xlu0.b32.cont [12/16] %v752, 128
        %785 = vxpose.xlu0.b32.cont [13/16] %v753, 128
        %786 = vxpose.xlu0.b32.cont [14/16] %v754, 128
        %787 = vxpose.xlu0.b32.cont [15/16] %v755, 128
        %788 = vxpose.xlu0.b32.end [16/16] %v756, 128
        %v789 = vpop.trf.xlu0
        %v790 = vpop.trf.xlu0
        %v791 = vpop.trf.xlu0
        %v792 = vpop.trf.xlu0
        %v793 = vpop.trf.xlu0
        %v794 = vpop.trf.xlu0
        %v795 = vpop.trf.xlu0
        %v796 = vpop.trf.xlu0
        %v797 = vpop.trf.xlu0
        %v798 = vpop.trf.xlu0
        %v799 = vpop.trf.xlu0
        %v800 = vpop.trf.xlu0
        %v801 = vpop.trf.xlu0
        %v802 = vpop.trf.xlu0
        %v803 = vpop.trf.xlu0
        %v804 = vpop.trf.xlu0
        %805 = vst [vmem:[%s391] sm:$0xff] %v789
        %806 = vst [vmem:[%s391 + $0x8] sm:$0xff] %v790
        %807 = vst [vmem:[%s391 + $0x10] sm:$0xff] %v791
        %808 = vst [vmem:[%s391 + $0x18] sm:$0xff] %v792
        %809 = vst [vmem:[%s391 + $0x20] sm:$0xff] %v793
        %810 = vst [vmem:[%s391 + $0x28] sm:$0xff] %v794
        %811 = vst [vmem:[%s391 + $0x30] sm:$0xff] %v795
        %812 = vst [vmem:[%s391 + $0x38] sm:$0xff] %v796
        %813 = vst [vmem:[%s391 + $0x40] sm:$0xff] %v797
        %814 = vst [vmem:[%s391 + $0x48] sm:$0xff] %v798
        %815 = vst [vmem:[%s391 + $0x50] sm:$0xff] %v799
        %816 = vst [vmem:[%s391 + $0x58] sm:$0xff] %v800
        %817 = vst [vmem:[%s391 + $0x60] sm:$0xff] %v801
        %818 = vst [vmem:[%s391 + $0x68] sm:$0xff] %v802
        %819 = vst [vmem:[%s391 + $0x70] sm:$0xff] %v803
        %820 = vst [vmem:[%s391 + $0x78] sm:$0xff] %v804
        %s821 = sand.u32 %s92, 1
        %s822 = scalar_lea.sflag [#allocation4], %s821
        %s823 = sand.u32 %s92, 1
        %s824 = smul.addr %s823, 128
        %s825 = scalar_lea.vmem [#allocation3], %s824
        %s826 = sand.u32 %s120, 1
        %s827 = sand.u32 %s120, 1
        %s828 = smul.addr %s827, 128
        %s829 = scalar_lea.vmem [#allocation5], %s828
        // Predicated region
        $region70: #{tpu_custom_call.1} parent=64 // pred_check
          %p830 = pneg %p102
        $region71: #{tpu_custom_call.1} parent=64 // pred_check_branch
          %832 = sbr.rel (%p830) target = $region73
        $region72: #{tpu_custom_call.1} parent=64 // pred_region
          %s833 = smul.u32 16, %s22
          %s834 = ssub.s32 20, %s833
          %p835 = scmp.lt.s32.totalorder %s834, 16
          %s836 = scalar_select %p835, %s834, 16
          %s837 = smul.u32 128, %s836
          %s839 = ssub.s32 2048, %s837
          %840 = vsyncadd %s822, %s839
          %p841 = scmp.ne.s32.totalorder 0, %s837
          %s842 = smul.addr %s833, 2
          %s843 = sadd.s32 %s23, %s842
          %s844 = smul.addr %s843, 128
          %s845 = scalar_lea.hbm %s2, %s844
          %s846 = smul.u32 8, %s836
          %s847 = sshll.u32 %s825, 4
          %s848 = int_to_ptr.vmem [resolvable:$true] %s847
          %s849 = sshll.u32 %s846, 4
          %853 = dma.vmem_to_hbm [thread:$0]  (%p841), %s848, %s849, %s845, %s822, 128, 256, 8
        $region73: #{tpu_custom_call.1} parent=64 // pred_fallthru
          _
        // Predicated region
        $region74: #{tpu_custom_call.1} parent=64 // pred_check
          %p854 = pneg %p130
        $region75: #{tpu_custom_call.1} parent=64 // pred_check_branch
          %856 = sbr.rel (%p854) target = $region77
        $region76: #{tpu_custom_call.1} parent=64 // pred_region
          %s857 = smul.u32 16, %s23
          %s858 = ssub.s32 25, %s857
          %p859 = scmp.lt.s32.totalorder %s858, 16
          %s860 = scalar_select %p859, %s858, 16
          %s861 = smul.u32 128, %s860
          %p862 = scmp.ne.s32.totalorder 0, %s861
          %s863 = smul.addr %s857, 2
          %s864 = sadd.s32 %s22, %s863
          %s865 = smul.addr %s864, 8
          %s866 = scalar_lea.vmem %s3, %s865
          // Predicated region
          $region78: #{tpu_custom_call.1} parent=76 // pred_check
            %p867 = pneg %p862
          $region79: #{tpu_custom_call.1} parent=76 // pred_check_branch
            %869 = sbr.rel (%p867) target = $region81
          $region80: #{tpu_custom_call.1} parent=76 // pred_region
            // Predicated region
            $region82: #{tpu_custom_call.1} parent=80 // pred_check
              _
            $region83: #{tpu_custom_call.1} parent=80 // pred_check_branch
              %871 = sbr.rel (0) target = $region85
            $region84: #{tpu_custom_call.1} parent=80 // pred_region
              // Predicated region
              $region104: #{tpu_custom_call.1} parent=84 // pred_check
                _
              $region105: #{tpu_custom_call.1} parent=84 // pred_check_branch
                %951 = sbr.rel (0) target = $region107
              $region106: #{tpu_custom_call.1} parent=84 // pred_region
                %s952 = sshrl.u32 %s860, 4
                // While loop
                $region108: #{tpu_custom_call.1} parent=106 // loop_pre_header
                  _
                $region109: #{tpu_custom_call.1} parent=106 // loop_header
                  %s954 = sphi 0, %s956
                  %p955 = scmp.ge.s32.totalorder %s954, %s952
                  %s959 = sphi 0, %s996
                  %s960 = sphi %s829, %s999
                  %s961 = sphi %s866, %s1000
                $region110: #{tpu_custom_call.1} parent=106 // loop_header_branch
                  %958 = sbr.rel (%p955) target = $region114
                $region111: #{tpu_custom_call.1} parent=106 // loop_body
                  %v962 = vld [vmem:[%s960] sm:$0xff]
                  %963 = vst [vmem:[%s961] sm:$0xff] %v962
                  %v964 = vld [vmem:[%s960 + $0x8] sm:$0xff]
                  %965 = vst [vmem:[%s961 + $0x10] sm:$0xff] %v964
                  %v966 = vld [vmem:[%s960 + $0x10] sm:$0xff]
                  %967 = vst [vmem:[%s961 + $0x20] sm:$0xff] %v966
                  %v968 = vld [vmem:[%s960 + $0x18] sm:$0xff]
                  %969 = vst [vmem:[%s961 + $0x30] sm:$0xff] %v968
                  %v970 = vld [vmem:[%s960 + $0x20] sm:$0xff]
                  %971 = vst [vmem:[%s961 + $0x40] sm:$0xff] %v970
                  %v972 = vld [vmem:[%s960 + $0x28] sm:$0xff]
                  %973 = vst [vmem:[%s961 + $0x50] sm:$0xff] %v972
                  %v974 = vld [vmem:[%s960 + $0x30] sm:$0xff]
                  %975 = vst [vmem:[%s961 + $0x60] sm:$0xff] %v974
                  %v976 = vld [vmem:[%s960 + $0x38] sm:$0xff]
                  %977 = vst [vmem:[%s961 + $0x70] sm:$0xff] %v976
                  %v978 = vld [vmem:[%s960 + $0x40] sm:$0xff]
                  %979 = vst [vmem:[%s961 + $0x80] sm:$0xff] %v978
                  %v980 = vld [vmem:[%s960 + $0x48] sm:$0xff]
                  %981 = vst [vmem:[%s961 + $0x90] sm:$0xff] %v980
                  %v982 = vld [vmem:[%s960 + $0x50] sm:$0xff]
                  %983 = vst [vmem:[%s961 + $0xa0] sm:$0xff] %v982
                  %v984 = vld [vmem:[%s960 + $0x58] sm:$0xff]
                  %985 = vst [vmem:[%s961 + $0xb0] sm:$0xff] %v984
                  %v986 = vld [vmem:[%s960 + $0x60] sm:$0xff]
                  %987 = vst [vmem:[%s961 + $0xc0] sm:$0xff] %v986
                  %v988 = vld [vmem:[%s960 + $0x68] sm:$0xff]
                  %989 = vst [vmem:[%s961 + $0xd0] sm:$0xff] %v988
                  %v990 = vld [vmem:[%s960 + $0x70] sm:$0xff]
                  %991 = vst [vmem:[%s961 + $0xe0] sm:$0xff] %v990
                  %v992 = vld [vmem:[%s960 + $0x78] sm:$0xff]
                  %993 = vst [vmem:[%s961 + $0xf0] sm:$0xff] %v992
                  %s994 = sadd.s32 1, %s959
                  %p995 = scmp.ge.s32.totalorder %s994, %s952
                  %s996 = scalar_select %p995, 0, %s994
                  %s997 = smul.u32 %s996, 128
                  %s998 = smul.u32 %s996, 256
                  %s999 = scalar_lea.vmem %s829, %s997 [#allocation5]
                  %s1000 = scalar_lea.vmem %s866, %s998
                $region112: #{tpu_custom_call.1} parent=106 // loop_footer
                  %s956 = sadd.s32 %s954, 1
                $region113: #{tpu_custom_call.1} parent=106 // loop_footer_branch
                  %953 = sbr.rel target = $region109
                $region114: #{tpu_custom_call.1} parent=106 // loop_exit
                  _
                %s1001 = sshrl.u32 %s860, 4
                %s1002 = sand.u32 %s860, 15
                %s1003 = smul.u32 %s1001, 16
                %s1004 = smul.u32 8, %s1003
                %s1005 = scalar_lea.vmem %s829, %s1004 [#allocation5]
                %s1006 = smul.u32 16, %s1003
                %s1007 = scalar_lea.vmem %s866, %s1006
                // While loop
                $region115: #{tpu_custom_call.1} parent=106 // loop_pre_header
                  _
                $region116: #{tpu_custom_call.1} parent=106 // loop_header
                  %s1009 = sphi 0, %s1011
                  %p1010 = scmp.ge.s32.totalorder %s1009, %s1002
                  %s1014 = sphi 0, %s1021
                  %s1015 = sphi %s1005, %s1024
                  %s1016 = sphi %s1007, %s1025
                $region117: #{tpu_custom_call.1} parent=106 // loop_header_branch
                  %1013 = sbr.rel (%p1010) target = $region121
                $region118: #{tpu_custom_call.1} parent=106 // loop_body
                  %v1017 = vld [vmem:[%s1015] sm:$0xff]
                  %1018 = vst [vmem:[%s1016] sm:$0xff] %v1017
                  %s1019 = sadd.s32 1, %s1014
                  %p1020 = scmp.ge.s32.totalorder %s1019, %s1002
                  %s1021 = scalar_select %p1020, 0, %s1019
                  %s1022 = smul.u32 %s1021, 8
                  %s1023 = smul.u32 %s1021, 16
                  %s1024 = scalar_lea.vmem %s1005, %s1022 [#allocation5]
                  %s1025 = scalar_lea.vmem %s1007, %s1023
                $region119: #{tpu_custom_call.1} parent=106 // loop_footer
                  %s1011 = sadd.s32 %s1009, 1
                $region120: #{tpu_custom_call.1} parent=106 // loop_footer_branch
                  %1008 = sbr.rel target = $region116
                $region121: #{tpu_custom_call.1} parent=106 // loop_exit
                  _
              $region107: #{tpu_custom_call.1} parent=84 // pred_fallthru
                _
              // Predicated region
              $region122: #{tpu_custom_call.1} parent=84 // pred_check
                _
              $region123: #{tpu_custom_call.1} parent=84 // pred_check_branch
                %1027 = sbr.rel target = $region125
              $region124: #{tpu_custom_call.1} parent=84 // pred_region
                _
              $region125: #{tpu_custom_call.1} parent=84 // pred_fallthru
                _
            $region85: #{tpu_custom_call.1} parent=80 // pred_fallthru
              _
            // Predicated region
            $region86: #{tpu_custom_call.1} parent=80 // pred_check
              _
            $region87: #{tpu_custom_call.1} parent=80 // pred_check_branch
              %873 = sbr.rel target = $region89
            $region88: #{tpu_custom_call.1} parent=80 // pred_region
              %s875 = ssub.s32 256, 1
              %s876 = sshrl.u32 %s860, 4
              // While loop
              $region90: #{tpu_custom_call.1} parent=88 // loop_pre_header
                _
              $region91: #{tpu_custom_call.1} parent=88 // loop_header
                %s878 = sphi 0, %s880
                %p879 = scmp.ge.s32.totalorder %s878, %s876
                %s883 = sphi 0, %s920
                %s884 = sphi %s829, %s923
                %s885 = sphi %s866, %s924
              $region92: #{tpu_custom_call.1} parent=88 // loop_header_branch
                %882 = sbr.rel (%p879) target = $region96
              $region93: #{tpu_custom_call.1} parent=88 // loop_body
                %v886 = vld [vmem:[%s884] sm:%s875]
                %887 = vst [vmem:[%s885] sm:%s875] %v886
                %v888 = vld [vmem:[%s884 + $0x8] sm:%s875]
                %889 = vst [vmem:[%s885 + $0x10] sm:%s875] %v888
                %v890 = vld [vmem:[%s884 + $0x10] sm:%s875]
                %891 = vst [vmem:[%s885 + $0x20] sm:%s875] %v890
                %v892 = vld [vmem:[%s884 + $0x18] sm:%s875]
                %893 = vst [vmem:[%s885 + $0x30] sm:%s875] %v892
                %v894 = vld [vmem:[%s884 + $0x20] sm:%s875]
                %895 = vst [vmem:[%s885 + $0x40] sm:%s875] %v894
                %v896 = vld [vmem:[%s884 + $0x28] sm:%s875]
                %897 = vst [vmem:[%s885 + $0x50] sm:%s875] %v896
                %v898 = vld [vmem:[%s884 + $0x30] sm:%s875]
                %899 = vst [vmem:[%s885 + $0x60] sm:%s875] %v898
                %v900 = vld [vmem:[%s884 + $0x38] sm:%s875]
                %901 = vst [vmem:[%s885 + $0x70] sm:%s875] %v900
                %v902 = vld [vmem:[%s884 + $0x40] sm:%s875]
                %903 = vst [vmem:[%s885 + $0x80] sm:%s875] %v902
                %v904 = vld [vmem:[%s884 + $0x48] sm:%s875]
                %905 = vst [vmem:[%s885 + $0x90] sm:%s875] %v904
                %v906 = vld [vmem:[%s884 + $0x50] sm:%s875]
                %907 = vst [vmem:[%s885 + $0xa0] sm:%s875] %v906
                %v908 = vld [vmem:[%s884 + $0x58] sm:%s875]
                %909 = vst [vmem:[%s885 + $0xb0] sm:%s875] %v908
                %v910 = vld [vmem:[%s884 + $0x60] sm:%s875]
                %911 = vst [vmem:[%s885 + $0xc0] sm:%s875] %v910
                %v912 = vld [vmem:[%s884 + $0x68] sm:%s875]
                %913 = vst [vmem:[%s885 + $0xd0] sm:%s875] %v912
                %v914 = vld [vmem:[%s884 + $0x70] sm:%s875]
                %915 = vst [vmem:[%s885 + $0xe0] sm:%s875] %v914
                %v916 = vld [vmem:[%s884 + $0x78] sm:%s875]
                %917 = vst [vmem:[%s885 + $0xf0] sm:%s875] %v916
                %s918 = sadd.s32 1, %s883
                %p919 = scmp.ge.s32.totalorder %s918, %s876
                %s920 = scalar_select %p919, 0, %s918
                %s921 = smul.u32 %s920, 128
                %s922 = smul.u32 %s920, 256
                %s923 = scalar_lea.vmem %s829, %s921 [#allocation5]
                %s924 = scalar_lea.vmem %s866, %s922
              $region94: #{tpu_custom_call.1} parent=88 // loop_footer
                %s880 = sadd.s32 %s878, 1
              $region95: #{tpu_custom_call.1} parent=88 // loop_footer_branch
                %877 = sbr.rel target = $region91
              $region96: #{tpu_custom_call.1} parent=88 // loop_exit
                _
              %s925 = sshrl.u32 %s860, 4
              %s926 = sand.u32 %s860, 15
              %s927 = smul.u32 %s925, 16
              %s928 = smul.u32 8, %s927
              %s929 = scalar_lea.vmem %s829, %s928 [#allocation5]
              %s930 = smul.u32 16, %s927
              %s931 = scalar_lea.vmem %s866, %s930
              // While loop
              $region97: #{tpu_custom_call.1} parent=88 // loop_pre_header
                _
              $region98: #{tpu_custom_call.1} parent=88 // loop_header
                %s933 = sphi 0, %s935
                %p934 = scmp.ge.s32.totalorder %s933, %s926
                %s938 = sphi 0, %s945
                %s939 = sphi %s929, %s948
                %s940 = sphi %s931, %s949
              $region99: #{tpu_custom_call.1} parent=88 // loop_header_branch
                %937 = sbr.rel (%p934) target = $region103
              $region100: #{tpu_custom_call.1} parent=88 // loop_body
                %v941 = vld [vmem:[%s939] sm:%s875]
                %942 = vst [vmem:[%s940] sm:%s875] %v941
                %s943 = sadd.s32 1, %s938
                %p944 = scmp.ge.s32.totalorder %s943, %s926
                %s945 = scalar_select %p944, 0, %s943
                %s946 = smul.u32 %s945, 8
                %s947 = smul.u32 %s945, 16
                %s948 = scalar_lea.vmem %s929, %s946 [#allocation5]
                %s949 = scalar_lea.vmem %s931, %s947
              $region101: #{tpu_custom_call.1} parent=88 // loop_footer
                %s935 = sadd.s32 %s933, 1
              $region102: #{tpu_custom_call.1} parent=88 // loop_footer_branch
                %932 = sbr.rel target = $region98
              $region103: #{tpu_custom_call.1} parent=88 // loop_exit
                _
            $region89: #{tpu_custom_call.1} parent=80 // pred_fallthru
              _
          $region81: #{tpu_custom_call.1} parent=76 // pred_fallthru
            _
          %1028 = vnop
        $region77: #{tpu_custom_call.1} parent=64 // pred_fallthru
          _
      $region65: #{tpu_custom_call.1} parent=5 // pred_fallthru
        _
      %p1029 = scmp.le.s32.totalorder 2, %s13
      // Predicated region
      $region126: #{tpu_custom_call.1} parent=5 // pred_check
        %p1030 = pneg %p1029
      $region127: #{tpu_custom_call.1} parent=5 // pred_check_branch
        %1032 = sbr.rel (%p1030) target = $region129
      $region128: #{tpu_custom_call.1} parent=5 // pred_region
        %s1033 = ssub.s32 %s13, 2
        // Predicated region
        $region130: #{tpu_custom_call.1} parent=128 // pred_check
          %p1034 = pneg %p108
        $region131: #{tpu_custom_call.1} parent=128 // pred_check_branch
          %1036 = sbr.rel (%p1034) target = $region133
        $region132: #{tpu_custom_call.1} parent=128 // pred_region
          %s1037 = sand.u32 %s93, 1
          %s1038 = scalar_lea.sflag [#allocation4], %s1037
          %s1039 = sand.u32 %s93, 1
          %s1040 = smul.addr %s1039, 128
          %s1041 = scalar_lea.vmem [#allocation3], %s1040
          %1042 = dma.done %s1038, 2048
        $region133: #{tpu_custom_call.1} parent=128 // pred_fallthru
          _
        // Predicated region
        $region134: #{tpu_custom_call.1} parent=128 // pred_check
          %p1043 = pneg %p136
        $region135: #{tpu_custom_call.1} parent=128 // pred_check_branch
          %1045 = sbr.rel (%p1043) target = $region137
        $region136: #{tpu_custom_call.1} parent=128 // pred_region
          %s1046 = sand.u32 %s121, 1
          %s1047 = sand.u32 %s121, 1
          %s1048 = smul.addr %s1047, 128
          %s1049 = scalar_lea.vmem [#allocation5], %s1048
        $region137: #{tpu_custom_call.1} parent=128 // pred_fallthru
          _
      $region129: #{tpu_custom_call.1} parent=5 // pred_fallthru
        _
    $region6: #{tpu_custom_call.1} parent=1 // loop_footer
      %s17 = sadd.s32 1, %s13
    $region7: #{tpu_custom_call.1} parent=1 // loop_footer_branch
      %12 = sbr.rel target = $region3
    $region8: #{tpu_custom_call.1} parent=1 // loop_exit
      _
    %1050 = vsyncpa [#allocation4], 1
    %s1051 = scalar_lea.sflag [#allocation4], 1
    %1052 = vsyncpa %s1051, 1

</llo_original>
